<compile_context>
chip_gen: v5e
topology: v5e:2x2
jax: 0.10.0
libtpu: 0.0.40
codegen_flags: <defaults>
</compile_context>

<pallas_src>
import functools

import jax
import jax.numpy as jnp
from jax import lax
from jax.experimental import pallas as pl
from jax.experimental.pallas import tpu as pltpu


def _round_up(x, m):
    return (x + m - 1) // m * m


def cnn_kernel(ids_ref, emb_ref, wconv_ref, bconv_ref, wfc_ref, bfc_ref, out_ref,
               *, kernel_heights, seq_pad_r, l_out, batch_tile):
    """Fused gather + conv + relu + global-max-pool + linear for one tile of examples.

    ids_ref  : (KH, M, 1) int32   per-tap token ids (M = batch_tile*seq_pad_r); -1 => zero row
    emb_ref  : (V, E)             embedding table (VMEM resident)
    wconv_ref: (KH, E, C)         conv weight (input channel folded away)
    bconv_ref: (1, C)             conv bias
    wfc_ref  : (C, O_pad)         fc weight, zero-padded to a lane-dense width (128)
    bfc_ref  : (1, O_pad)         fc bias (zero-padded)
    out_ref  : (batch_tile, O_pad)
    """
    m = batch_tile * seq_pad_r
    vocab = emb_ref.shape[0]
    c = wconv_ref.shape[2]

    vocab_iota = lax.broadcasted_iota(jnp.int32, (m, vocab), 1)

    # Conv2d with kernel width == E reduces to KH full-slab matmuls; the k-shift is already
    # baked into ids_ref[k], so each tap is gather (one-hot MXU matmul) + (M,E)x(E,C) matmul.
    acc = jnp.zeros((m, c), jnp.float32)
    for k in range(kernel_heights):
        ids_k = ids_ref[k]                                            # (M, 1) int32
        onehot_k = (vocab_iota == ids_k).astype(jnp.float32)          # (M, V); all-zero row for id == -1
        x_k = jnp.dot(onehot_k, emb_ref[...],
                      preferred_element_type=jnp.float32)             # (M, E) fused gather + pad
        acc = acc + jnp.dot(x_k, wconv_ref[k],
                            preferred_element_type=jnp.float32)       # (M, C)

    act = jnp.maximum(acc + bconv_ref[...], 0.0)                      # bias + ReLU (f32 VPU)

    # Global max-pool over the l_out valid conv positions of each example.
    # seq_pad_r % 8 == 0, so this reshape is a tile-aligned sublane split.
    act3 = act.reshape(batch_tile, seq_pad_r, c)
    pos = lax.broadcasted_iota(jnp.int32, act3.shape, 1)
    act3 = jnp.where(pos < l_out, act3, 0.0)                          # ReLU >= 0, so 0 is neutral
    pooled = jnp.max(act3, axis=1)                                    # (batch_tile, C)

    # FC: one (batch_tile, C) x (C, O_pad) matmul, lane-dense (batch_tile, 128) store.
    out_ref[...] = (jnp.dot(pooled, wfc_ref[...],
                            preferred_element_type=jnp.float32) + bfc_ref[...])


def cnn_forward(x_ids, emb_table, wconv, bconv, wfc, bfc,
                *, kernel_heights, stride, padding, batch_tile=8):
    # TODO(synk): stride > 1 via strided pl.ds addressing (keep it an index change, no reshape).
    assert stride == 1
    assert batch_tile % 8 == 0

    B, S = x_ids.shape
    V, E = emb_table.shape
    KH, _, C = wconv.shape
    assert KH == kernel_heights
    O = wfc.shape[1]

    seq_pad = S + 2 * padding
    assert seq_pad >= kernel_heights, "padded sequence shorter than conv kernel"
    l_out = (seq_pad - kernel_heights) // stride + 1

    seq_pad_r = _round_up(seq_pad, 8)          # tile-aligned rows per example
    b_pad = _round_up(B, batch_tile)
    m = batch_tile * seq_pad_r                 # MXU M per grid step (128 for batch_tile=8)
    o_pad = _round_up(O, 128)                  # lane-dense output stores

    # Token-id plumbing (int32, ~E*4x smaller than gathered f32 activations).
    # Per-example row layout: [conv-pad | S tokens | conv-pad | tile-pad]; -1 => zero embedding row.
    ids_p = jnp.full((b_pad, seq_pad_r), -1, jnp.int32)
    ids_p = ids_p.at[:B, padding:padding + S].set(x_ids.astype(jnp.int32))
    # Per-tap id planes: plane k at position l holds the id at position l+k (the conv shift).
    ids_taps = jnp.stack(
        [jnp.pad(ids_p[:, k:], ((0, 0), (0, k)), constant_values=-1)
         for k in range(kernel_heights)], axis=0)                      # (KH, b_pad, seq_pad_r)
    ids_taps = ids_taps.reshape(kernel_heights, b_pad * seq_pad_r, 1)

    # Lane-dense FC params.
    wfc_p = jnp.zeros((C, o_pad), wfc.dtype).at[:, :O].set(wfc)
    bfc_p = jnp.zeros((1, o_pad), bfc.dtype).at[:, :O].set(bfc)

    kern = functools.partial(cnn_kernel, kernel_heights=kernel_heights,
                             seq_pad_r=seq_pad_r, l_out=l_out, batch_tile=batch_tile)

    out = pl.pallas_call(
        kern,
        out_shape=jax.ShapeDtypeStruct((b_pad, o_pad), jnp.float32),
        grid_spec=pltpu.PrefetchScalarGridSpec(
            num_scalar_prefetch=0,
            grid=(b_pad // batch_tile,),
            in_specs=[
                pl.BlockSpec((kernel_heights, m, 1), lambda i: (0, i, 0)),  # per-tap ids for this tile
                pl.BlockSpec((V, E), lambda i: (0, 0)),                     # embedding table (resident)
                pl.BlockSpec((kernel_heights, E, C), lambda i: (0, 0, 0)),  # conv weight (resident)
                pl.BlockSpec((1, C), lambda i: (0, 0)),                     # conv bias
                pl.BlockSpec((C, o_pad), lambda i: (0, 0)),                 # fc weight (lane-dense)
                pl.BlockSpec((1, o_pad), lambda i: (0, 0)),                 # fc bias
            ],
            out_specs=pl.BlockSpec((batch_tile, o_pad), lambda i: (i, 0)),
        ),
        compiler_params=pltpu.CompilerParams(
            dimension_semantics=("parallel",)),
    )(ids_taps, emb_table, wconv, bconv, wfc_p, bfc_p)

    return out[:B, :O]


def cnn_reference(x_ids, emb_table, wconv, bconv, wfc, bfc,
                  *, kernel_heights, stride, padding):
    """Pure-JAX reference matching the PyTorch forward."""
    emb = emb_table[x_ids]
    emb_p = jnp.pad(emb, ((0, 0), (padding, padding), (0, 0)))
    l_out = (emb_p.shape[1] - kernel_heights) // stride + 1
    B = x_ids.shape[0]
    C = wconv.shape[2]
    acc = jnp.zeros((B, l_out, C), jnp.float32)
    for k in range(kernel_heights):
        acc = acc + jnp.einsum('ble,ec->blc', emb_p[:, k:k + l_out, :], wconv[k])
    act = jnp.maximum(acc + bconv[None, :, :], 0.0)
    pooled = jnp.max(act, axis=1)
    return pooled @ wfc + bfc


if __name__ == "__main__":
    # Small shapes consistent with the module's forward.
    vocab_size, emb_size, padding_idx = 100, 32, 0
    output_size, out_channels = 4, 16
    kernel_heights, stride, padding = 3, 1, 1
    B, S = 2, 8

    key = jax.random.PRNGKey(0)
    k_emb, k_wc, k_bc, k_wf, k_bf, k_x = jax.random.split(key, 6)

    # Deterministic synthetic parameters (PyTorch shapes noted; re-laid-out for the kernel).
    emb_table = 0.1 * jax.random.normal(k_emb, (vocab_size, emb_size), jnp.float32)
    emb_table = emb_table.at[padding_idx].set(0.0)                   # padding_idx row = 0
    wconv_pt = 0.1 * jax.random.normal(k_wc, (out_channels, 1, kernel_heights, emb_size),
                                       jnp.float32)                   # (C_out, C_in=1, KH, KW=E)
    wconv = jnp.transpose(wconv_pt[:, 0], (1, 2, 0))                   # -> (KH, E, C)
    bconv = 0.1 * jax.random.normal(k_bc, (1, out_channels), jnp.float32)
    wfc_pt = 0.1 * jax.random.normal(k_wf, (output_size, out_channels), jnp.float32)
    wfc = wfc_pt.T                                                     # -> (C, O)
    bfc = 0.1 * jax.random.normal(k_bf, (1, output_size), jnp.float32)

    x_ids = jax.random.randint(k_x, (B, S), 0, vocab_size, dtype=jnp.int32)

    out = cnn_forward(x_ids, emb_table, wconv, bconv, wfc, bfc,
                      kernel_heights=kernel_heights, stride=stride, padding=padding)
    out = jax.block_until_ready(out)

    ref = cnn_reference(x_ids, emb_table, wconv, bconv, wfc, bfc,
                        kernel_heights=kernel_heights, stride=stride, padding=padding)
    assert out.shape == (B, output_size)
    assert jnp.allclose(out, ref, atol=1e-4, rtol=1e-4), (out, ref)
    print("KERNEL_OK")
</pallas_src>

<mosaic_0001>
module attributes {stable_mosaic.version = 11 : i64} {
  func.func @cnn_kernel(%arg0: i32, %arg1: memref<3x128x1xi32, #tpu.memory_space<vmem>>, %arg2: memref<100x32xf32, #tpu.memory_space<vmem>>, %arg3: memref<3x32x16xf32, #tpu.memory_space<vmem>>, %arg4: memref<1x16xf32, #tpu.memory_space<vmem>>, %arg5: memref<16x128xf32, #tpu.memory_space<vmem>>, %arg6: memref<1x128xf32, #tpu.memory_space<vmem>>, %arg7: memref<8x128xf32, #tpu.memory_space<vmem>>) attributes {dimension_semantics = [#tpu.dimension_semantics<parallel>], iteration_bounds = array<i64: 1>, scalar_prefetch = 0 : i64, scratch_operands = 0 : i64, tpu.core_type = #tpu.core_type<tc>, window_params = [{transform_indices = @transform_0, window_bounds = array<i64: 3, 128, 1>}, {pipeline_mode = #tpu.pipeline_mode<synchronous>, transform_indices = @transform_1, window_bounds = array<i64: 100, 32>}, {pipeline_mode = #tpu.pipeline_mode<synchronous>, transform_indices = @transform_2, window_bounds = array<i64: 3, 32, 16>}, {pipeline_mode = #tpu.pipeline_mode<synchronous>, transform_indices = @transform_3, window_bounds = array<i64: 1, 16>}, {pipeline_mode = #tpu.pipeline_mode<synchronous>, transform_indices = @transform_4, window_bounds = array<i64: 16, 128>}, {pipeline_mode = #tpu.pipeline_mode<synchronous>, transform_indices = @transform_5, window_bounds = array<i64: 1, 128>}, {transform_indices = @transform_6, window_bounds = array<i64: 8, 128>}]} {
    %0 = tpu.iota {dimensions = array<i32: 1>} : vector<128x100xi32>
    %cst = arith.constant 0.000000e+00 : f32
    %1 = vector.broadcast %cst : f32 to vector<128x16xf32>
    %c0 = arith.constant 0 : index
    %c0_0 = arith.constant 0 : index
    %c0_1 = arith.constant 0 : index
    %2 = vector.load %arg1[%c0, %c0_0, %c0_1] : memref<3x128x1xi32, #tpu.memory_space<vmem>>, vector<1x128x1xi32>
    %3 = vector.shape_cast %2 : vector<1x128x1xi32> to vector<128x1xi32>
    %4 = vector.broadcast %3 : vector<128x1xi32> to vector<128x100xi32>
    %5 = arith.cmpi eq, %0, %4 : vector<128x100xi32>
    %6 = arith.extui %5 : vector<128x100xi1> to vector<128x100xi32>
    %7 = arith.sitofp %6 : vector<128x100xi32> to vector<128x100xf32>
    %c0_2 = arith.constant 0 : index
    %c0_3 = arith.constant 0 : index
    %8 = vector.load %arg2[%c0_2, %c0_3] : memref<100x32xf32, #tpu.memory_space<vmem>>, vector<100x32xf32>
    %cst_4 = arith.constant dense<0.000000e+00> : vector<128x32xf32>
    %9 = tpu.matmul %7, %8, %cst_4 {dimension_numbers = #tpu.dot_dimension_numbers<[1], [0], [0], [1], [0, 0, 1, 1], [], []>} : vector<128x100xf32>, vector<100x32xf32>, vector<128x32xf32> -> vector<128x32xf32>
    %c0_5 = arith.constant 0 : index
    %c0_6 = arith.constant 0 : index
    %c0_7 = arith.constant 0 : index
    %10 = vector.load %arg3[%c0_5, %c0_6, %c0_7] : memref<3x32x16xf32, #tpu.memory_space<vmem>>, vector<1x32x16xf32>
    %11 = vector.shape_cast %10 : vector<1x32x16xf32> to vector<32x16xf32>
    %cst_8 = arith.constant dense<0.000000e+00> : vector<128x16xf32>
    %12 = tpu.matmul %9, %11, %cst_8 {dimension_numbers = #tpu.dot_dimension_numbers<[1], [0], [0], [1], [0, 0, 1, 1], [], []>} : vector<128x32xf32>, vector<32x16xf32>, vector<128x16xf32> -> vector<128x16xf32>
    %13 = arith.addf %1, %12 : vector<128x16xf32>
    %c1 = arith.constant 1 : index
    %c0_9 = arith.constant 0 : index
    %c0_10 = arith.constant 0 : index
    %14 = vector.load %arg1[%c1, %c0_9, %c0_10] : memref<3x128x1xi32, #tpu.memory_space<vmem>>, vector<1x128x1xi32>
    %15 = vector.shape_cast %14 : vector<1x128x1xi32> to vector<128x1xi32>
    %16 = vector.broadcast %15 : vector<128x1xi32> to vector<128x100xi32>
    %17 = arith.cmpi eq, %0, %16 : vector<128x100xi32>
    %18 = arith.extui %17 : vector<128x100xi1> to vector<128x100xi32>
    %19 = arith.sitofp %18 : vector<128x100xi32> to vector<128x100xf32>
    %c0_11 = arith.constant 0 : index
    %c0_12 = arith.constant 0 : index
    %20 = vector.load %arg2[%c0_11, %c0_12] : memref<100x32xf32, #tpu.memory_space<vmem>>, vector<100x32xf32>
    %cst_13 = arith.constant dense<0.000000e+00> : vector<128x32xf32>
    %21 = tpu.matmul %19, %20, %cst_13 {dimension_numbers = #tpu.dot_dimension_numbers<[1], [0], [0], [1], [0, 0, 1, 1], [], []>} : vector<128x100xf32>, vector<100x32xf32>, vector<128x32xf32> -> vector<128x32xf32>
    %c1_14 = arith.constant 1 : index
    %c0_15 = arith.constant 0 : index
    %c0_16 = arith.constant 0 : index
    %22 = vector.load %arg3[%c1_14, %c0_15, %c0_16] : memref<3x32x16xf32, #tpu.memory_space<vmem>>, vector<1x32x16xf32>
    %23 = vector.shape_cast %22 : vector<1x32x16xf32> to vector<32x16xf32>
    %cst_17 = arith.constant dense<0.000000e+00> : vector<128x16xf32>
    %24 = tpu.matmul %21, %23, %cst_17 {dimension_numbers = #tpu.dot_dimension_numbers<[1], [0], [0], [1], [0, 0, 1, 1], [], []>} : vector<128x32xf32>, vector<32x16xf32>, vector<128x16xf32> -> vector<128x16xf32>
    %25 = arith.addf %13, %24 : vector<128x16xf32>
    %c2 = arith.constant 2 : index
    %c0_18 = arith.constant 0 : index
    %c0_19 = arith.constant 0 : index
    %26 = vector.load %arg1[%c2, %c0_18, %c0_19] : memref<3x128x1xi32, #tpu.memory_space<vmem>>, vector<1x128x1xi32>
    %27 = vector.shape_cast %26 : vector<1x128x1xi32> to vector<128x1xi32>
    %28 = vector.broadcast %27 : vector<128x1xi32> to vector<128x100xi32>
    %29 = arith.cmpi eq, %0, %28 : vector<128x100xi32>
    %30 = arith.extui %29 : vector<128x100xi1> to vector<128x100xi32>
    %31 = arith.sitofp %30 : vector<128x100xi32> to vector<128x100xf32>
    %c0_20 = arith.constant 0 : index
    %c0_21 = arith.constant 0 : index
    %32 = vector.load %arg2[%c0_20, %c0_21] : memref<100x32xf32, #tpu.memory_space<vmem>>, vector<100x32xf32>
    %cst_22 = arith.constant dense<0.000000e+00> : vector<128x32xf32>
    %33 = tpu.matmul %31, %32, %cst_22 {dimension_numbers = #tpu.dot_dimension_numbers<[1], [0], [0], [1], [0, 0, 1, 1], [], []>} : vector<128x100xf32>, vector<100x32xf32>, vector<128x32xf32> -> vector<128x32xf32>
    %c2_23 = arith.constant 2 : index
    %c0_24 = arith.constant 0 : index
    %c0_25 = arith.constant 0 : index
    %34 = vector.load %arg3[%c2_23, %c0_24, %c0_25] : memref<3x32x16xf32, #tpu.memory_space<vmem>>, vector<1x32x16xf32>
    %35 = vector.shape_cast %34 : vector<1x32x16xf32> to vector<32x16xf32>
    %cst_26 = arith.constant dense<0.000000e+00> : vector<128x16xf32>
    %36 = tpu.matmul %33, %35, %cst_26 {dimension_numbers = #tpu.dot_dimension_numbers<[1], [0], [0], [1], [0, 0, 1, 1], [], []>} : vector<128x32xf32>, vector<32x16xf32>, vector<128x16xf32> -> vector<128x16xf32>
    %37 = arith.addf %25, %36 : vector<128x16xf32>
    %c0_27 = arith.constant 0 : index
    %c0_28 = arith.constant 0 : index
    %38 = vector.load %arg4[%c0_27, %c0_28] : memref<1x16xf32, #tpu.memory_space<vmem>>, vector<1x16xf32>
    %39 = vector.broadcast %38 : vector<1x16xf32> to vector<128x16xf32>
    %40 = arith.addf %37, %39 : vector<128x16xf32>
    %cst_29 = arith.constant 0.000000e+00 : f32
    %41 = vector.broadcast %cst_29 : f32 to vector<128x16xf32>
    %42 = arith.maximumf %40, %41 : vector<128x16xf32>
    %43 = vector.shape_cast %42 : vector<128x16xf32> to vector<8x16x16xf32>
    %44 = tpu.iota {dimensions = array<i32: 1>} : vector<8x16x16xi32>
    %c8_i32 = arith.constant 8 : i32
    %45 = vector.broadcast %c8_i32 : i32 to vector<8x16x16xi32>
    %46 = arith.cmpi slt, %44, %45 : vector<8x16x16xi32>
    %cst_30 = arith.constant 0.000000e+00 : f32
    %47 = vector.broadcast %cst_30 : f32 to vector<8x16x16xf32>
    %48 = arith.select %46, %43, %47 : vector<8x16x16xi1>, vector<8x16x16xf32>
    %cst_31 = arith.constant dense<0xFF800000> : vector<8x16xf32>
    %49 = vector.multi_reduction <maximumf>, %48, %cst_31 [1] : vector<8x16x16xf32> to vector<8x16xf32>
    %c0_32 = arith.constant 0 : index
    %c0_33 = arith.constant 0 : index
    %50 = vector.load %arg5[%c0_32, %c0_33] : memref<16x128xf32, #tpu.memory_space<vmem>>, vector<16x128xf32>
    %cst_34 = arith.constant dense<0.000000e+00> : vector<8x128xf32>
    %51 = tpu.matmul %49, %50, %cst_34 {dimension_numbers = #tpu.dot_dimension_numbers<[1], [0], [0], [1], [0, 0, 1, 1], [], []>} : vector<8x16xf32>, vector<16x128xf32>, vector<8x128xf32> -> vector<8x128xf32>
    %c0_35 = arith.constant 0 : index
    %c0_36 = arith.constant 0 : index
    %52 = vector.load %arg6[%c0_35, %c0_36] : memref<1x128xf32, #tpu.memory_space<vmem>>, vector<1x128xf32>
    %53 = vector.broadcast %52 : vector<1x128xf32> to vector<8x128xf32>
    %54 = arith.addf %51, %53 : vector<8x128xf32>
    %c0_37 = arith.constant 0 : index
    %c0_38 = arith.constant 0 : index
    %55 = vector.load %arg7[%c0_37, %c0_38] : memref<8x128xf32, #tpu.memory_space<vmem>>, vector<8x128xf32>
    tpu.vector_store %arg7[%c0_37, %c0_38], %54 {strides = array<i32>} : memref<8x128xf32, #tpu.memory_space<vmem>>, vector<8x128xf32>,
    return
  }
  func.func @transform_0(%arg0: i32) -> (i32, i32, i32) {
    %c0_i32 = arith.constant 0 : i32
    %c0_i32_0 = arith.constant 0 : i32
    %c0_i32_1 = arith.constant 0 : i32
    return %c0_i32, %arg0, %c0_i32_0 : i32, i32, i32
  }
  func.func @transform_1(%arg0: i32) -> (i32, i32) {
    %c0_i32 = arith.constant 0 : i32
    %c0_i32_0 = arith.constant 0 : i32
    %c0_i32_1 = arith.constant 0 : i32
    return %c0_i32, %c0_i32_0 : i32, i32
  }
  func.func @transform_2(%arg0: i32) -> (i32, i32, i32) {
    %c0_i32 = arith.constant 0 : i32
    %c0_i32_0 = arith.constant 0 : i32
    %c0_i32_1 = arith.constant 0 : i32
    %c0_i32_2 = arith.constant 0 : i32
    return %c0_i32, %c0_i32_0, %c0_i32_1 : i32, i32, i32
  }
  func.func @transform_3(%arg0: i32) -> (i32, i32) {
    %c0_i32 = arith.constant 0 : i32
    %c0_i32_0 = arith.constant 0 : i32
    %c0_i32_1 = arith.constant 0 : i32
    return %c0_i32, %c0_i32_0 : i32, i32
  }
  func.func @transform_4(%arg0: i32) -> (i32, i32) {
    %c0_i32 = arith.constant 0 : i32
    %c0_i32_0 = arith.constant 0 : i32
    %c0_i32_1 = arith.constant 0 : i32
    return %c0_i32, %c0_i32_0 : i32, i32
  }
  func.func @transform_5(%arg0: i32) -> (i32, i32) {
    %c0_i32 = arith.constant 0 : i32
    %c0_i32_0 = arith.constant 0 : i32
    %c0_i32_1 = arith.constant 0 : i32
    return %c0_i32, %c0_i32_0 : i32, i32
  }
  func.func @transform_6(%arg0: i32) -> (i32, i32) {
    %c0_i32 = arith.constant 0 : i32
    %c0_i32_0 = arith.constant 0 : i32
    return %arg0, %c0_i32 : i32, i32
  }
}

</mosaic_0001>

<llo_original>
// kernel: tpu_custom_call.1
$region0: #{tpu_custom_call.1}
  #allocation0 [shape = 'u32[]', space=smem, size = 0x4, offset = 0x4, fixed_abs, tag = 'smem constant byte address 0x4 - core index']
  #allocation1 [shape = 'u32[72,128]{1,0:T(1,128)}', space=vmem, size = 0x9000, scoped, tag = 'internal scratch']
  %s0 = inlined_call_operand.vmem [shape: s32[3,128,1], index: 0, kind: input, shape index: {}]
  %s1 = inlined_call_operand.vmem [shape: f32[100,32], index: 1, kind: input, shape index: {}]
  %s2 = inlined_call_operand.vmem [shape: f32[3,32,16], index: 2, kind: input, shape index: {}]
  %s3 = inlined_call_operand.vmem [shape: f32[1,16], index: 3, kind: input, shape index: {}]
  %s4 = inlined_call_operand.vmem [shape: f32[16,128], index: 4, kind: input, shape index: {}]
  %s5 = inlined_call_operand.vmem [shape: f32[1,128], index: 5, kind: input, shape index: {}]
  %s6 = inlined_call_operand.hbm [shape: f32[8,128], index: 6, kind: output, shape index: {}]
  %s7 = sld [smem:[#allocation0]]
  $region34: #{tpu_custom_call.1} parent=0
    _
  %s9 = ssub.s32 1, %s7
  %s10 = scalar_select 0, %s9, %s7
  $region1: #{tpu_custom_call.1} parent=0
    #allocation2 [shape = 'u8[4096]{0}', space=vmem, size = 0x1000, scoped, tag = 'output window, operand 0, single buffered']
    #allocation3 [shape = 's32[1]{0}', space=sflag, size = 0x4, scoped, tag = 'scoped memory for tpu_custom_call.1']
    %11 = vsyncpa [#allocation3], 0
    // Predicated region
    $region2: #{tpu_custom_call.1} parent=1 // pred_check
      _
    $region3: #{tpu_custom_call.1} parent=1 // pred_check_branch
      %13 = sbr.rel (0) target = $region5
    $region4: #{tpu_custom_call.1} parent=1 // pred_region
      _
    $region5: #{tpu_custom_call.1} parent=1 // pred_fallthru
      _
    // Predicated region
    $region6: #{tpu_custom_call.1} parent=1 // pred_check
      _
    $region7: #{tpu_custom_call.1} parent=1 // pred_check_branch
      %15 = sbr.rel (0) target = $region9
    $region8: #{tpu_custom_call.1} parent=1 // pred_region
      _
    $region9: #{tpu_custom_call.1} parent=1 // pred_fallthru
      _
    // Predicated region
    $region10: #{tpu_custom_call.1} parent=1 // pred_check
      _
    $region11: #{tpu_custom_call.1} parent=1 // pred_check_branch
      %17 = sbr.rel (0) target = $region13
    $region12: #{tpu_custom_call.1} parent=1 // pred_region
      _
    $region13: #{tpu_custom_call.1} parent=1 // pred_fallthru
      _
    // Predicated region
    $region14: #{tpu_custom_call.1} parent=1 // pred_check
      _
    $region15: #{tpu_custom_call.1} parent=1 // pred_check_branch
      %19 = sbr.rel (0) target = $region17
    $region16: #{tpu_custom_call.1} parent=1 // pred_region
      _
    $region17: #{tpu_custom_call.1} parent=1 // pred_fallthru
      _
    // Predicated region
    $region18: #{tpu_custom_call.1} parent=1 // pred_check
      _
    $region19: #{tpu_custom_call.1} parent=1 // pred_check_branch
      %21 = sbr.rel (0) target = $region21
    $region20: #{tpu_custom_call.1} parent=1 // pred_region
      _
    $region21: #{tpu_custom_call.1} parent=1 // pred_fallthru
      _
    // Predicated region
    $region22: #{tpu_custom_call.1} parent=1 // pred_check
      _
    $region23: #{tpu_custom_call.1} parent=1 // pred_check_branch
      %23 = sbr.rel (0) target = $region25
    $region24: #{tpu_custom_call.1} parent=1 // pred_region
      _
    $region25: #{tpu_custom_call.1} parent=1 // pred_fallthru
      _
    %v24 = vlaneseq
    %v25 = vand.u32 %v24, 127
    %v26 = vld [vmem:[%s0] sm:$0xff]
    %v27 = vld [vmem:[%s0 + $0x8] sm:$0xff]
    %v28 = vld [vmem:[%s0 + $0x10] sm:$0xff]
    %v29 = vld [vmem:[%s0 + $0x18] sm:$0xff]
    %v30 = vld [vmem:[%s0 + $0x20] sm:$0xff]
    %v31 = vld [vmem:[%s0 + $0x28] sm:$0xff]
    %v32 = vld [vmem:[%s0 + $0x30] sm:$0xff]
    %v33 = vld [vmem:[%s0 + $0x38] sm:$0xff]
    %v34 = vld [vmem:[%s0 + $0x40] sm:$0xff]
    %v35 = vld [vmem:[%s0 + $0x48] sm:$0xff]
    %v36 = vld [vmem:[%s0 + $0x50] sm:$0xff]
    %v37 = vld [vmem:[%s0 + $0x58] sm:$0xff]
    %v38 = vld [vmem:[%s0 + $0x60] sm:$0xff]
    %v39 = vld [vmem:[%s0 + $0x68] sm:$0xff]
    %v40 = vld [vmem:[%s0 + $0x70] sm:$0xff]
    %v41 = vld [vmem:[%s0 + $0x78] sm:$0xff]
    %42 = vset.pattern.permute.xlu0 0
    %43 = vperm.xlu0 %42, %v26
    %v44 = vpop.permute.xlu0 %43
    %45 = vset.pattern.permute.xlu0 0
    %46 = vperm.xlu0 %45, %v27
    %v47 = vpop.permute.xlu0 %46
    %48 = vset.pattern.permute.xlu0 0
    %49 = vperm.xlu0 %48, %v28
    %v50 = vpop.permute.xlu0 %49
    %51 = vset.pattern.permute.xlu0 0
    %52 = vperm.xlu0 %51, %v29
    %v53 = vpop.permute.xlu0 %52
    %54 = vset.pattern.permute.xlu0 0
    %55 = vperm.xlu0 %54, %v30
    %v56 = vpop.permute.xlu0 %55
    %57 = vset.pattern.permute.xlu0 0
    %58 = vperm.xlu0 %57, %v31
    %v59 = vpop.permute.xlu0 %58
    %60 = vset.pattern.permute.xlu0 0
    %61 = vperm.xlu0 %60, %v32
    %v62 = vpop.permute.xlu0 %61
    %63 = vset.pattern.permute.xlu0 0
    %64 = vperm.xlu0 %63, %v33
    %v65 = vpop.permute.xlu0 %64
    %66 = vset.pattern.permute.xlu0 0
    %67 = vperm.xlu0 %66, %v34
    %v68 = vpop.permute.xlu0 %67
    %69 = vset.pattern.permute.xlu0 0
    %70 = vperm.xlu0 %69, %v35
    %v71 = vpop.permute.xlu0 %70
    %72 = vset.pattern.permute.xlu0 0
    %73 = vperm.xlu0 %72, %v36
    %v74 = vpop.permute.xlu0 %73
    %75 = vset.pattern.permute.xlu0 0
    %76 = vperm.xlu0 %75, %v37
    %v77 = vpop.permute.xlu0 %76
    %78 = vset.pattern.permute.xlu0 0
    %79 = vperm.xlu0 %78, %v38
    %v80 = vpop.permute.xlu0 %79
    %81 = vset.pattern.permute.xlu0 0
    %82 = vperm.xlu0 %81, %v39
    %v83 = vpop.permute.xlu0 %82
    %84 = vset.pattern.permute.xlu0 0
    %85 = vperm.xlu0 %84, %v40
    %v86 = vpop.permute.xlu0 %85
    %87 = vset.pattern.permute.xlu0 0
    %88 = vperm.xlu0 %87, %v41
    %v89 = vpop.permute.xlu0 %88
    %vm90 = vcmp.eq.s32.totalorder %v25, %v44
    %vm91 = vcmp.eq.s32.totalorder %v25, %v47
    %vm92 = vcmp.eq.s32.totalorder %v25, %v50
    %vm93 = vcmp.eq.s32.totalorder %v25, %v53
    %vm94 = vcmp.eq.s32.totalorder %v25, %v56
    %vm95 = vcmp.eq.s32.totalorder %v25, %v59
    %vm96 = vcmp.eq.s32.totalorder %v25, %v62
    %vm97 = vcmp.eq.s32.totalorder %v25, %v65
    %vm98 = vcmp.eq.s32.totalorder %v25, %v68
    %vm99 = vcmp.eq.s32.totalorder %v25, %v71
    %vm100 = vcmp.eq.s32.totalorder %v25, %v74
    %vm101 = vcmp.eq.s32.totalorder %v25, %v77
    %vm102 = vcmp.eq.s32.totalorder %v25, %v80
    %vm103 = vcmp.eq.s32.totalorder %v25, %v83
    %vm104 = vcmp.eq.s32.totalorder %v25, %v86
    %vm105 = vcmp.eq.s32.totalorder %v25, %v89
    %v106 = vsel %vm90, 1, 0
    %v107 = vsel %vm91, 1, 0
    %v108 = vsel %vm92, 1, 0
    %v109 = vsel %vm93, 1, 0
    %v110 = vsel %vm94, 1, 0
    %v111 = vsel %vm95, 1, 0
    %v112 = vsel %vm96, 1, 0
    %v113 = vsel %vm97, 1, 0
    %v114 = vsel %vm98, 1, 0
    %v115 = vsel %vm99, 1, 0
    %v116 = vsel %vm100, 1, 0
    %v117 = vsel %vm101, 1, 0
    %v118 = vsel %vm102, 1, 0
    %v119 = vsel %vm103, 1, 0
    %v120 = vsel %vm104, 1, 0
    %v121 = vsel %vm105, 1, 0
    %v122 = vcvt.s32.f32 %v106
    %v123 = vcvt.s32.f32 %v107
    %v124 = vcvt.s32.f32 %v108
    %v125 = vcvt.s32.f32 %v109
    %v126 = vcvt.s32.f32 %v110
    %v127 = vcvt.s32.f32 %v111
    %v128 = vcvt.s32.f32 %v112
    %v129 = vcvt.s32.f32 %v113
    %v130 = vcvt.s32.f32 %v114
    %v131 = vcvt.s32.f32 %v115
    %v132 = vcvt.s32.f32 %v116
    %v133 = vcvt.s32.f32 %v117
    %v134 = vcvt.s32.f32 %v118
    %v135 = vcvt.s32.f32 %v119
    %v136 = vcvt.s32.f32 %v120
    %v137 = vcvt.s32.f32 %v121
    %v138 = vld [vmem:[%s1] sm:$0xff]
    %v139 = vld [vmem:[%s1 + $0x8] sm:$0xff]
    %v140 = vld [vmem:[%s1 + $0x10] sm:$0xff]
    %v141 = vld [vmem:[%s1 + $0x18] sm:$0xff]
    %v142 = vld [vmem:[%s1 + $0x20] sm:$0xff]
    %v143 = vld [vmem:[%s1 + $0x28] sm:$0xff]
    %v144 = vld [vmem:[%s1 + $0x30] sm:$0xff]
    %v145 = vld [vmem:[%s1 + $0x38] sm:$0xff]
    %v146 = vld [vmem:[%s1 + $0x40] sm:$0xff]
    %v147 = vld [vmem:[%s1 + $0x48] sm:$0xff]
    %v148 = vld [vmem:[%s1 + $0x50] sm:$0xff]
    %v149 = vld [vmem:[%s1 + $0x58] sm:$0xff]
    %v150 = vld [vmem:[%s1 + $0x60] sm:$0xf]
    %vm151 = vcmask 818176
    %v153 = vsel %vm151, %v122, 0
    %v156 = vsel %vm151, %v123, 0
    %v159 = vsel %vm151, %v124, 0
    %v162 = vsel %vm151, %v125, 0
    %v165 = vsel %vm151, %v126, 0
    %v168 = vsel %vm151, %v127, 0
    %v171 = vsel %vm151, %v128, 0
    %v174 = vsel %vm151, %v129, 0
    %v177 = vsel %vm151, %v130, 0
    %v180 = vsel %vm151, %v131, 0
    %v183 = vsel %vm151, %v132, 0
    %v186 = vsel %vm151, %v133, 0
    %v189 = vsel %vm151, %v134, 0
    %v192 = vsel %vm151, %v135, 0
    %v195 = vsel %vm151, %v136, 0
    %v198 = vsel %vm151, %v137, 0
    %vm200 = vcmask 1043456
    %v202 = vsel %vm200, %v150, 0
    %204 = vmatpush.msra.mxu0 0.0
    %205 = vmatpush.msra.mxu0 0.0
    %206 = vmatpush.msra.mxu0 0.0
    %207 = vmatpush.msra.mxu0 %v202
    %208 = vmatpush.msra.mxu0 %v149
    %209 = vmatpush.msra.mxu0 %v148
    %210 = vmatpush.msra.mxu0 %v147
    %211 = vmatpush.msra.mxu0 %v146
    %212 = vmatpush.msra.mxu0 %v145
    %213 = vmatpush.msra.mxu0 %v144
    %214 = vmatpush.msra.mxu0 %v143
    %215 = vmatpush.msra.mxu0 %v142
    %216 = vmatpush.msra.mxu0 %v141
    %217 = vmatpush.msra.mxu0 %v140
    %218 = vmatpush.msra.mxu0 %v139
    %219 = vmatpush.msra.mxu0 %v138
    %220 = vmatmul.f32.gmra.mxu0 %v153
    %v221 = vpop.f32.mrf.mxu0
    %v222 = vadd.f32 0.0, %v221
    %223 = vmatmul.f32.gmra.mxu0 %v156
    %v224 = vpop.f32.mrf.mxu0
    %v225 = vadd.f32 0.0, %v224
    %226 = vmatmul.f32.gmra.mxu0 %v159
    %v227 = vpop.f32.mrf.mxu0
    %v228 = vadd.f32 0.0, %v227
    %229 = vmatmul.f32.gmra.mxu0 %v162
    %v230 = vpop.f32.mrf.mxu0
    %v231 = vadd.f32 0.0, %v230
    %232 = vmatmul.f32.gmra.mxu0 %v165
    %v233 = vpop.f32.mrf.mxu0
    %v234 = vadd.f32 0.0, %v233
    %235 = vmatmul.f32.gmra.mxu0 %v168
    %v236 = vpop.f32.mrf.mxu0
    %v237 = vadd.f32 0.0, %v236
    %238 = vmatmul.f32.gmra.mxu0 %v171
    %v239 = vpop.f32.mrf.mxu0
    %v240 = vadd.f32 0.0, %v239
    %241 = vmatmul.f32.gmra.mxu0 %v174
    %v242 = vpop.f32.mrf.mxu0
    %v243 = vadd.f32 0.0, %v242
    %244 = vmatmul.f32.gmra.mxu0 %v177
    %v245 = vpop.f32.mrf.mxu0
    %v246 = vadd.f32 0.0, %v245
    %247 = vmatmul.f32.gmra.mxu0 %v180
    %v248 = vpop.f32.mrf.mxu0
    %v249 = vadd.f32 0.0, %v248
    %250 = vmatmul.f32.gmra.mxu0 %v183
    %v251 = vpop.f32.mrf.mxu0
    %v252 = vadd.f32 0.0, %v251
    %253 = vmatmul.f32.gmra.mxu0 %v186
    %v254 = vpop.f32.mrf.mxu0
    %v255 = vadd.f32 0.0, %v254
    %256 = vmatmul.f32.gmra.mxu0 %v189
    %v257 = vpop.f32.mrf.mxu0
    %v258 = vadd.f32 0.0, %v257
    %259 = vmatmul.f32.gmra.mxu0 %v192
    %v260 = vpop.f32.mrf.mxu0
    %v261 = vadd.f32 0.0, %v260
    %262 = vmatmul.f32.gmra.mxu0 %v195
    %v263 = vpop.f32.mrf.mxu0
    %v264 = vadd.f32 0.0, %v263
    %265 = vmatmul.f32.gmra.mxu0 %v198
    %v266 = vpop.f32.mrf.mxu0
    %v267 = vadd.f32 0.0, %v266
    %268 = vdwg.mxu0
    %v269 = vld [vmem:[%s2] sm:$0xff]
    %v270 = vld [vmem:[%s2 + $0x8] sm:$0xff]
    %v271 = vld [vmem:[%s2 + $0x10] sm:$0xff]
    %v272 = vld [vmem:[%s2 + $0x18] sm:$0xff]
    %s273 = scalar_lea.vmem %s0, 128
    %v274 = vld [vmem:[%s273] sm:$0xff]
    %v275 = vld [vmem:[%s273 + $0x8] sm:$0xff]
    %v276 = vld [vmem:[%s273 + $0x10] sm:$0xff]
    %v277 = vld [vmem:[%s273 + $0x18] sm:$0xff]
    %v278 = vld [vmem:[%s273 + $0x20] sm:$0xff]
    %v279 = vld [vmem:[%s273 + $0x28] sm:$0xff]
    %v280 = vld [vmem:[%s273 + $0x30] sm:$0xff]
    %v281 = vld [vmem:[%s273 + $0x38] sm:$0xff]
    %v282 = vld [vmem:[%s273 + $0x40] sm:$0xff]
    %v283 = vld [vmem:[%s273 + $0x48] sm:$0xff]
    %v284 = vld [vmem:[%s273 + $0x50] sm:$0xff]
    %v285 = vld [vmem:[%s273 + $0x58] sm:$0xff]
    %v286 = vld [vmem:[%s273 + $0x60] sm:$0xff]
    %v287 = vld [vmem:[%s273 + $0x68] sm:$0xff]
    %v288 = vld [vmem:[%s273 + $0x70] sm:$0xff]
    %v289 = vld [vmem:[%s273 + $0x78] sm:$0xff]
    %290 = vset.pattern.permute.xlu0 0
    %291 = vperm.xlu0 %290, %v274
    %v292 = vpop.permute.xlu0 %291
    %293 = vset.pattern.permute.xlu0 0
    %294 = vperm.xlu0 %293, %v275
    %v295 = vpop.permute.xlu0 %294
    %296 = vset.pattern.permute.xlu0 0
    %297 = vperm.xlu0 %296, %v276
    %v298 = vpop.permute.xlu0 %297
    %299 = vset.pattern.permute.xlu0 0
    %300 = vperm.xlu0 %299, %v277
    %v301 = vpop.permute.xlu0 %300
    %302 = vset.pattern.permute.xlu0 0
    %303 = vperm.xlu0 %302, %v278
    %v304 = vpop.permute.xlu0 %303
    %305 = vset.pattern.permute.xlu0 0
    %306 = vperm.xlu0 %305, %v279
    %v307 = vpop.permute.xlu0 %306
    %308 = vset.pattern.permute.xlu0 0
    %309 = vperm.xlu0 %308, %v280
    %v310 = vpop.permute.xlu0 %309
    %311 = vset.pattern.permute.xlu0 0
    %312 = vperm.xlu0 %311, %v281
    %v313 = vpop.permute.xlu0 %312
    %314 = vset.pattern.permute.xlu0 0
    %315 = vperm.xlu0 %314, %v282
    %v316 = vpop.permute.xlu0 %315
    %317 = vset.pattern.permute.xlu0 0
    %318 = vperm.xlu0 %317, %v283
    %v319 = vpop.permute.xlu0 %318
    %320 = vset.pattern.permute.xlu0 0
    %321 = vperm.xlu0 %320, %v284
    %v322 = vpop.permute.xlu0 %321
    %323 = vset.pattern.permute.xlu0 0
    %324 = vperm.xlu0 %323, %v285
    %v325 = vpop.permute.xlu0 %324
    %326 = vset.pattern.permute.xlu0 0
    %327 = vperm.xlu0 %326, %v286
    %v328 = vpop.permute.xlu0 %327
    %329 = vset.pattern.permute.xlu0 0
    %330 = vperm.xlu0 %329, %v287
    %v331 = vpop.permute.xlu0 %330
    %332 = vset.pattern.permute.xlu0 0
    %333 = vperm.xlu0 %332, %v288
    %v334 = vpop.permute.xlu0 %333
    %335 = vset.pattern.permute.xlu0 0
    %336 = vperm.xlu0 %335, %v289
    %v337 = vpop.permute.xlu0 %336
    %vm338 = vcmp.eq.s32.totalorder %v25, %v292
    %vm339 = vcmp.eq.s32.totalorder %v25, %v295
    %vm340 = vcmp.eq.s32.totalorder %v25, %v298
    %vm341 = vcmp.eq.s32.totalorder %v25, %v301
    %vm342 = vcmp.eq.s32.totalorder %v25, %v304
    %vm343 = vcmp.eq.s32.totalorder %v25, %v307
    %vm344 = vcmp.eq.s32.totalorder %v25, %v310
    %vm345 = vcmp.eq.s32.totalorder %v25, %v313
    %vm346 = vcmp.eq.s32.totalorder %v25, %v316
    %vm347 = vcmp.eq.s32.totalorder %v25, %v319
    %vm348 = vcmp.eq.s32.totalorder %v25, %v322
    %vm349 = vcmp.eq.s32.totalorder %v25, %v325
    %vm350 = vcmp.eq.s32.totalorder %v25, %v328
    %vm351 = vcmp.eq.s32.totalorder %v25, %v331
    %vm352 = vcmp.eq.s32.totalorder %v25, %v334
    %vm353 = vcmp.eq.s32.totalorder %v25, %v337
    %v354 = vsel %vm338, 1, 0
    %v355 = vsel %vm339, 1, 0
    %v356 = vsel %vm340, 1, 0
    %v357 = vsel %vm341, 1, 0
    %v358 = vsel %vm342, 1, 0
    %v359 = vsel %vm343, 1, 0
    %v360 = vsel %vm344, 1, 0
    %v361 = vsel %vm345, 1, 0
    %v362 = vsel %vm346, 1, 0
    %v363 = vsel %vm347, 1, 0
    %v364 = vsel %vm348, 1, 0
    %v365 = vsel %vm349, 1, 0
    %v366 = vsel %vm350, 1, 0
    %v367 = vsel %vm351, 1, 0
    %v368 = vsel %vm352, 1, 0
    %v369 = vsel %vm353, 1, 0
    %v370 = vcvt.s32.f32 %v354
    %v371 = vcvt.s32.f32 %v355
    %v372 = vcvt.s32.f32 %v356
    %v373 = vcvt.s32.f32 %v357
    %v374 = vcvt.s32.f32 %v358
    %v375 = vcvt.s32.f32 %v359
    %v376 = vcvt.s32.f32 %v360
    %v377 = vcvt.s32.f32 %v361
    %v378 = vcvt.s32.f32 %v362
    %v379 = vcvt.s32.f32 %v363
    %v380 = vcvt.s32.f32 %v364
    %v381 = vcvt.s32.f32 %v365
    %v382 = vcvt.s32.f32 %v366
    %v383 = vcvt.s32.f32 %v367
    %v384 = vcvt.s32.f32 %v368
    %v385 = vcvt.s32.f32 %v369
    %v387 = vsel %vm151, %v370, 0
    %v390 = vsel %vm151, %v371, 0
    %v393 = vsel %vm151, %v372, 0
    %v396 = vsel %vm151, %v373, 0
    %v399 = vsel %vm151, %v374, 0
    %v402 = vsel %vm151, %v375, 0
    %v405 = vsel %vm151, %v376, 0
    %v408 = vsel %vm151, %v377, 0
    %v411 = vsel %vm151, %v378, 0
    %v414 = vsel %vm151, %v379, 0
    %v417 = vsel %vm151, %v380, 0
    %v420 = vsel %vm151, %v381, 0
    %v423 = vsel %vm151, %v382, 0
    %v426 = vsel %vm151, %v383, 0
    %v429 = vsel %vm151, %v384, 0
    %v432 = vsel %vm151, %v385, 0
    %434 = vmatpush.msra.mxu0 0.0
    %435 = vmatpush.msra.mxu0 0.0
    %436 = vmatpush.msra.mxu0 0.0
    %437 = vmatpush.msra.mxu0 %v202
    %438 = vmatpush.msra.mxu0 %v149
    %439 = vmatpush.msra.mxu0 %v148
    %440 = vmatpush.msra.mxu0 %v147
    %441 = vmatpush.msra.mxu0 %v146
    %442 = vmatpush.msra.mxu0 %v145
    %443 = vmatpush.msra.mxu0 %v144
    %444 = vmatpush.msra.mxu0 %v143
    %445 = vmatpush.msra.mxu0 %v142
    %446 = vmatpush.msra.mxu0 %v141
    %447 = vmatpush.msra.mxu0 %v140
    %448 = vmatpush.msra.mxu0 %v139
    %449 = vmatpush.msra.mxu0 %v138
    %450 = vmatmul.f32.gmra.mxu0 %v387
    %v451 = vpop.f32.mrf.mxu0
    %v452 = vadd.f32 0.0, %v451
    %453 = vmatmul.f32.gmra.mxu0 %v390
    %v454 = vpop.f32.mrf.mxu0
    %v455 = vadd.f32 0.0, %v454
    %456 = vmatmul.f32.gmra.mxu0 %v393
    %v457 = vpop.f32.mrf.mxu0
    %v458 = vadd.f32 0.0, %v457
    %459 = vmatmul.f32.gmra.mxu0 %v396
    %v460 = vpop.f32.mrf.mxu0
    %v461 = vadd.f32 0.0, %v460
    %462 = vmatmul.f32.gmra.mxu0 %v399
    %v463 = vpop.f32.mrf.mxu0
    %v464 = vadd.f32 0.0, %v463
    %465 = vmatmul.f32.gmra.mxu0 %v402
    %v466 = vpop.f32.mrf.mxu0
    %v467 = vadd.f32 0.0, %v466
    %468 = vmatmul.f32.gmra.mxu0 %v405
    %v469 = vpop.f32.mrf.mxu0
    %v470 = vadd.f32 0.0, %v469
    %471 = vmatmul.f32.gmra.mxu0 %v408
    %v472 = vpop.f32.mrf.mxu0
    %v473 = vadd.f32 0.0, %v472
    %474 = vmatmul.f32.gmra.mxu0 %v411
    %v475 = vpop.f32.mrf.mxu0
    %v476 = vadd.f32 0.0, %v475
    %477 = vmatmul.f32.gmra.mxu0 %v414
    %v478 = vpop.f32.mrf.mxu0
    %v479 = vadd.f32 0.0, %v478
    %480 = vmatmul.f32.gmra.mxu0 %v417
    %v481 = vpop.f32.mrf.mxu0
    %v482 = vadd.f32 0.0, %v481
    %483 = vmatmul.f32.gmra.mxu0 %v420
    %v484 = vpop.f32.mrf.mxu0
    %v485 = vadd.f32 0.0, %v484
    %486 = vmatmul.f32.gmra.mxu0 %v423
    %v487 = vpop.f32.mrf.mxu0
    %v488 = vadd.f32 0.0, %v487
    %489 = vmatmul.f32.gmra.mxu0 %v426
    %v490 = vpop.f32.mrf.mxu0
    %v491 = vadd.f32 0.0, %v490
    %492 = vmatmul.f32.gmra.mxu0 %v429
    %v493 = vpop.f32.mrf.mxu0
    %v494 = vadd.f32 0.0, %v493
    %495 = vmatmul.f32.gmra.mxu0 %v432
    %v496 = vpop.f32.mrf.mxu0
    %v497 = vadd.f32 0.0, %v496
    %498 = vdwg.mxu0
    %s499 = scalar_lea.vmem %s2, 32
    %v500 = vld [vmem:[%s499] sm:$0xff]
    %v501 = vld [vmem:[%s499 + $0x8] sm:$0xff]
    %v502 = vld [vmem:[%s499 + $0x10] sm:$0xff]
    %v503 = vld [vmem:[%s499 + $0x18] sm:$0xff]
    %vm504 = vcmask 261120
    %v506 = vsel %vm504, %v452, 0
    %v509 = vsel %vm504, %v455, 0
    %v512 = vsel %vm504, %v458, 0
    %v515 = vsel %vm504, %v461, 0
    %v518 = vsel %vm504, %v464, 0
    %v521 = vsel %vm504, %v467, 0
    %v524 = vsel %vm504, %v470, 0
    %v527 = vsel %vm504, %v473, 0
    %v530 = vsel %vm504, %v476, 0
    %v533 = vsel %vm504, %v479, 0
    %v536 = vsel %vm504, %v482, 0
    %v539 = vsel %vm504, %v485, 0
    %v542 = vsel %vm504, %v488, 0
    %v545 = vsel %vm504, %v491, 0
    %v548 = vsel %vm504, %v494, 0
    %v551 = vsel %vm504, %v497, 0
    %553 = vmatpush.msra.mxu0 0.0
    %554 = vmatpush.msra.mxu0 0.0
    %555 = vmatpush.msra.mxu0 0.0
    %556 = vmatpush.msra.mxu0 0.0
    %557 = vmatpush.msra.mxu0 0.0
    %558 = vmatpush.msra.mxu0 0.0
    %559 = vmatpush.msra.mxu0 0.0
    %560 = vmatpush.msra.mxu0 0.0
    %561 = vmatpush.msra.mxu0 0.0
    %562 = vmatpush.msra.mxu0 0.0
    %563 = vmatpush.msra.mxu0 0.0
    %564 = vmatpush.msra.mxu0 0.0
    %565 = vmatpush.msra.mxu0 %v503
    %566 = vmatpush.msra.mxu0 %v502
    %567 = vmatpush.msra.mxu0 %v501
    %568 = vmatpush.msra.mxu0 %v500
    %569 = vmatmul.f32.gmra.mxu0 %v506
    %v570 = vpop.f32.mrf.mxu0
    %v571 = vadd.f32 0.0, %v570
    %572 = vmatmul.f32.gmra.mxu0 %v509
    %v573 = vpop.f32.mrf.mxu0
    %v574 = vadd.f32 0.0, %v573
    %575 = vmatmul.f32.gmra.mxu0 %v512
    %v576 = vpop.f32.mrf.mxu0
    %v577 = vadd.f32 0.0, %v576
    %578 = vmatmul.f32.gmra.mxu0 %v515
    %v579 = vpop.f32.mrf.mxu0
    %v580 = vadd.f32 0.0, %v579
    %581 = vmatmul.f32.gmra.mxu0 %v518
    %v582 = vpop.f32.mrf.mxu0
    %v583 = vadd.f32 0.0, %v582
    %584 = vmatmul.f32.gmra.mxu0 %v521
    %v585 = vpop.f32.mrf.mxu0
    %v586 = vadd.f32 0.0, %v585
    %587 = vmatmul.f32.gmra.mxu0 %v524
    %v588 = vpop.f32.mrf.mxu0
    %v589 = vadd.f32 0.0, %v588
    %590 = vmatmul.f32.gmra.mxu0 %v527
    %v591 = vpop.f32.mrf.mxu0
    %v592 = vadd.f32 0.0, %v591
    %593 = vmatmul.f32.gmra.mxu0 %v530
    %v594 = vpop.f32.mrf.mxu0
    %v595 = vadd.f32 0.0, %v594
    %596 = vmatmul.f32.gmra.mxu0 %v533
    %v597 = vpop.f32.mrf.mxu0
    %v598 = vadd.f32 0.0, %v597
    %599 = vmatmul.f32.gmra.mxu0 %v536
    %v600 = vpop.f32.mrf.mxu0
    %v601 = vadd.f32 0.0, %v600
    %602 = vmatmul.f32.gmra.mxu0 %v539
    %v603 = vpop.f32.mrf.mxu0
    %v604 = vadd.f32 0.0, %v603
    %605 = vmatmul.f32.gmra.mxu0 %v542
    %v606 = vpop.f32.mrf.mxu0
    %v607 = vadd.f32 0.0, %v606
    %608 = vmatmul.f32.gmra.mxu0 %v545
    %v609 = vpop.f32.mrf.mxu0
    %v610 = vadd.f32 0.0, %v609
    %611 = vmatmul.f32.gmra.mxu0 %v548
    %v612 = vpop.f32.mrf.mxu0
    %v613 = vadd.f32 0.0, %v612
    %614 = vmatmul.f32.gmra.mxu0 %v551
    %v615 = vpop.f32.mrf.mxu0
    %v616 = vadd.f32 0.0, %v615
    %617 = vdwg.mxu0
    %v619 = vsel %vm504, %v222, 0
    %v622 = vsel %vm504, %v225, 0
    %v625 = vsel %vm504, %v228, 0
    %v628 = vsel %vm504, %v231, 0
    %v631 = vsel %vm504, %v234, 0
    %v634 = vsel %vm504, %v237, 0
    %v637 = vsel %vm504, %v240, 0
    %v640 = vsel %vm504, %v243, 0
    %v643 = vsel %vm504, %v246, 0
    %v646 = vsel %vm504, %v249, 0
    %v649 = vsel %vm504, %v252, 0
    %v652 = vsel %vm504, %v255, 0
    %v655 = vsel %vm504, %v258, 0
    %v658 = vsel %vm504, %v261, 0
    %v661 = vsel %vm504, %v264, 0
    %v664 = vsel %vm504, %v267, 0
    %666 = vmatpush.msra.mxu0 0.0
    %667 = vmatpush.msra.mxu0 0.0
    %668 = vmatpush.msra.mxu0 0.0
    %669 = vmatpush.msra.mxu0 0.0
    %670 = vmatpush.msra.mxu0 0.0
    %671 = vmatpush.msra.mxu0 0.0
    %672 = vmatpush.msra.mxu0 0.0
    %673 = vmatpush.msra.mxu0 0.0
    %674 = vmatpush.msra.mxu0 0.0
    %675 = vmatpush.msra.mxu0 0.0
    %676 = vmatpush.msra.mxu0 0.0
    %677 = vmatpush.msra.mxu0 0.0
    %678 = vmatpush.msra.mxu0 %v272
    %679 = vmatpush.msra.mxu0 %v271
    %680 = vmatpush.msra.mxu0 %v270
    %681 = vmatpush.msra.mxu0 %v269
    %682 = vmatmul.f32.gmra.mxu0 %v619
    %v683 = vpop.f32.mrf.mxu0
    %v684 = vadd.f32 %v571, %v683
    %685 = vmatmul.f32.gmra.mxu0 %v622
    %v686 = vpop.f32.mrf.mxu0
    %v687 = vadd.f32 %v574, %v686
    %688 = vmatmul.f32.gmra.mxu0 %v625
    %v689 = vpop.f32.mrf.mxu0
    %v690 = vadd.f32 %v577, %v689
    %691 = vmatmul.f32.gmra.mxu0 %v628
    %v692 = vpop.f32.mrf.mxu0
    %v693 = vadd.f32 %v580, %v692
    %694 = vmatmul.f32.gmra.mxu0 %v631
    %v695 = vpop.f32.mrf.mxu0
    %v696 = vadd.f32 %v583, %v695
    %697 = vmatmul.f32.gmra.mxu0 %v634
    %v698 = vpop.f32.mrf.mxu0
    %v699 = vadd.f32 %v586, %v698
    %700 = vmatmul.f32.gmra.mxu0 %v637
    %v701 = vpop.f32.mrf.mxu0
    %v702 = vadd.f32 %v589, %v701
    %703 = vmatmul.f32.gmra.mxu0 %v640
    %v704 = vpop.f32.mrf.mxu0
    %v705 = vadd.f32 %v592, %v704
    %706 = vmatmul.f32.gmra.mxu0 %v643
    %v707 = vpop.f32.mrf.mxu0
    %v708 = vadd.f32 %v595, %v707
    %709 = vmatmul.f32.gmra.mxu0 %v646
    %v710 = vpop.f32.mrf.mxu0
    %v711 = vadd.f32 %v598, %v710
    %712 = vmatmul.f32.gmra.mxu0 %v649
    %v713 = vpop.f32.mrf.mxu0
    %v714 = vadd.f32 %v601, %v713
    %715 = vmatmul.f32.gmra.mxu0 %v652
    %v716 = vpop.f32.mrf.mxu0
    %v717 = vadd.f32 %v604, %v716
    %718 = vmatmul.f32.gmra.mxu0 %v655
    %v719 = vpop.f32.mrf.mxu0
    %v720 = vadd.f32 %v607, %v719
    %721 = vmatmul.f32.gmra.mxu0 %v658
    %v722 = vpop.f32.mrf.mxu0
    %v723 = vadd.f32 %v610, %v722
    %724 = vmatmul.f32.gmra.mxu0 %v661
    %v725 = vpop.f32.mrf.mxu0
    %v726 = vadd.f32 %v613, %v725
    %727 = vmatmul.f32.gmra.mxu0 %v664
    %v728 = vpop.f32.mrf.mxu0
    %v729 = vadd.f32 %v616, %v728
    %730 = vdwg.mxu0
    %s731 = scalar_lea.vmem %s0, 256
    %v732 = vld [vmem:[%s731] sm:$0xff]
    %v733 = vld [vmem:[%s731 + $0x8] sm:$0xff]
    %v734 = vld [vmem:[%s731 + $0x10] sm:$0xff]
    %v735 = vld [vmem:[%s731 + $0x18] sm:$0xff]
    %v736 = vld [vmem:[%s731 + $0x20] sm:$0xff]
    %v737 = vld [vmem:[%s731 + $0x28] sm:$0xff]
    %v738 = vld [vmem:[%s731 + $0x30] sm:$0xff]
    %v739 = vld [vmem:[%s731 + $0x38] sm:$0xff]
    %v740 = vld [vmem:[%s731 + $0x40] sm:$0xff]
    %v741 = vld [vmem:[%s731 + $0x48] sm:$0xff]
    %v742 = vld [vmem:[%s731 + $0x50] sm:$0xff]
    %v743 = vld [vmem:[%s731 + $0x58] sm:$0xff]
    %v744 = vld [vmem:[%s731 + $0x60] sm:$0xff]
    %v745 = vld [vmem:[%s731 + $0x68] sm:$0xff]
    %v746 = vld [vmem:[%s731 + $0x70] sm:$0xff]
    %v747 = vld [vmem:[%s731 + $0x78] sm:$0xff]
    %748 = vset.pattern.permute.xlu0 0
    %749 = vperm.xlu0 %748, %v732
    %v750 = vpop.permute.xlu0 %749
    %751 = vset.pattern.permute.xlu0 0
    %752 = vperm.xlu0 %751, %v733
    %v753 = vpop.permute.xlu0 %752
    %754 = vset.pattern.permute.xlu0 0
    %755 = vperm.xlu0 %754, %v734
    %v756 = vpop.permute.xlu0 %755
    %757 = vset.pattern.permute.xlu0 0
    %758 = vperm.xlu0 %757, %v735
    %v759 = vpop.permute.xlu0 %758
    %760 = vset.pattern.permute.xlu0 0
    %761 = vperm.xlu0 %760, %v736
    %v762 = vpop.permute.xlu0 %761
    %763 = vset.pattern.permute.xlu0 0
    %764 = vperm.xlu0 %763, %v737
    %v765 = vpop.permute.xlu0 %764
    %766 = vset.pattern.permute.xlu0 0
    %767 = vperm.xlu0 %766, %v738
    %v768 = vpop.permute.xlu0 %767
    %769 = vset.pattern.permute.xlu0 0
    %770 = vperm.xlu0 %769, %v739
    %v771 = vpop.permute.xlu0 %770
    %772 = vset.pattern.permute.xlu0 0
    %773 = vperm.xlu0 %772, %v740
    %v774 = vpop.permute.xlu0 %773
    %775 = vset.pattern.permute.xlu0 0
    %776 = vperm.xlu0 %775, %v741
    %v777 = vpop.permute.xlu0 %776
    %778 = vset.pattern.permute.xlu0 0
    %779 = vperm.xlu0 %778, %v742
    %v780 = vpop.permute.xlu0 %779
    %781 = vset.pattern.permute.xlu0 0
    %782 = vperm.xlu0 %781, %v743
    %v783 = vpop.permute.xlu0 %782
    %784 = vset.pattern.permute.xlu0 0
    %785 = vperm.xlu0 %784, %v744
    %v786 = vpop.permute.xlu0 %785
    %787 = vset.pattern.permute.xlu0 0
    %788 = vperm.xlu0 %787, %v745
    %v789 = vpop.permute.xlu0 %788
    %790 = vset.pattern.permute.xlu0 0
    %791 = vperm.xlu0 %790, %v746
    %v792 = vpop.permute.xlu0 %791
    %793 = vset.pattern.permute.xlu0 0
    %794 = vperm.xlu0 %793, %v747
    %v795 = vpop.permute.xlu0 %794
    %vm796 = vcmp.eq.s32.totalorder %v25, %v750
    %vm797 = vcmp.eq.s32.totalorder %v25, %v753
    %vm798 = vcmp.eq.s32.totalorder %v25, %v756
    %vm799 = vcmp.eq.s32.totalorder %v25, %v759
    %vm800 = vcmp.eq.s32.totalorder %v25, %v762
    %vm801 = vcmp.eq.s32.totalorder %v25, %v765
    %vm802 = vcmp.eq.s32.totalorder %v25, %v768
    %vm803 = vcmp.eq.s32.totalorder %v25, %v771
    %vm804 = vcmp.eq.s32.totalorder %v25, %v774
    %vm805 = vcmp.eq.s32.totalorder %v25, %v777
    %vm806 = vcmp.eq.s32.totalorder %v25, %v780
    %vm807 = vcmp.eq.s32.totalorder %v25, %v783
    %vm808 = vcmp.eq.s32.totalorder %v25, %v786
    %vm809 = vcmp.eq.s32.totalorder %v25, %v789
    %vm810 = vcmp.eq.s32.totalorder %v25, %v792
    %vm811 = vcmp.eq.s32.totalorder %v25, %v795
    %v812 = vsel %vm796, 1, 0
    %v813 = vsel %vm797, 1, 0
    %v814 = vsel %vm798, 1, 0
    %v815 = vsel %vm799, 1, 0
    %v816 = vsel %vm800, 1, 0
    %v817 = vsel %vm801, 1, 0
    %v818 = vsel %vm802, 1, 0
    %v819 = vsel %vm803, 1, 0
    %v820 = vsel %vm804, 1, 0
    %v821 = vsel %vm805, 1, 0
    %v822 = vsel %vm806, 1, 0
    %v823 = vsel %vm807, 1, 0
    %v824 = vsel %vm808, 1, 0
    %v825 = vsel %vm809, 1, 0
    %v826 = vsel %vm810, 1, 0
    %v827 = vsel %vm811, 1, 0
    %v828 = vcvt.s32.f32 %v812
    %v829 = vcvt.s32.f32 %v813
    %v830 = vcvt.s32.f32 %v814
    %v831 = vcvt.s32.f32 %v815
    %v832 = vcvt.s32.f32 %v816
    %v833 = vcvt.s32.f32 %v817
    %v834 = vcvt.s32.f32 %v818
    %v835 = vcvt.s32.f32 %v819
    %v836 = vcvt.s32.f32 %v820
    %v837 = vcvt.s32.f32 %v821
    %v838 = vcvt.s32.f32 %v822
    %v839 = vcvt.s32.f32 %v823
    %v840 = vcvt.s32.f32 %v824
    %v841 = vcvt.s32.f32 %v825
    %v842 = vcvt.s32.f32 %v826
    %v843 = vcvt.s32.f32 %v827
    %v845 = vsel %vm151, %v828, 0
    %v848 = vsel %vm151, %v829, 0
    %v851 = vsel %vm151, %v830, 0
    %v854 = vsel %vm151, %v831, 0
    %v857 = vsel %vm151, %v832, 0
    %v860 = vsel %vm151, %v833, 0
    %v863 = vsel %vm151, %v834, 0
    %v866 = vsel %vm151, %v835, 0
    %v869 = vsel %vm151, %v836, 0
    %v872 = vsel %vm151, %v837, 0
    %v875 = vsel %vm151, %v838, 0
    %v878 = vsel %vm151, %v839, 0
    %v881 = vsel %vm151, %v840, 0
    %v884 = vsel %vm151, %v841, 0
    %v887 = vsel %vm151, %v842, 0
    %v890 = vsel %vm151, %v843, 0
    %892 = vmatpush.msra.mxu0 0.0
    %893 = vmatpush.msra.mxu0 0.0
    %894 = vmatpush.msra.mxu0 0.0
    %895 = vmatpush.msra.mxu0 %v202
    %896 = vmatpush.msra.mxu0 %v149
    %897 = vmatpush.msra.mxu0 %v148
    %898 = vmatpush.msra.mxu0 %v147
    %899 = vmatpush.msra.mxu0 %v146
    %900 = vmatpush.msra.mxu0 %v145
    %901 = vmatpush.msra.mxu0 %v144
    %902 = vmatpush.msra.mxu0 %v143
    %903 = vmatpush.msra.mxu0 %v142
    %904 = vmatpush.msra.mxu0 %v141
    %905 = vmatpush.msra.mxu0 %v140
    %906 = vmatpush.msra.mxu0 %v139
    %907 = vmatpush.msra.mxu0 %v138
    %908 = vmatmul.f32.gmra.mxu0 %v845
    %v909 = vpop.f32.mrf.mxu0
    %v910 = vadd.f32 0.0, %v909
    %911 = vmatmul.f32.gmra.mxu0 %v848
    %v912 = vpop.f32.mrf.mxu0
    %v913 = vadd.f32 0.0, %v912
    %914 = vmatmul.f32.gmra.mxu0 %v851
    %v915 = vpop.f32.mrf.mxu0
    %v916 = vadd.f32 0.0, %v915
    %917 = vmatmul.f32.gmra.mxu0 %v854
    %v918 = vpop.f32.mrf.mxu0
    %v919 = vadd.f32 0.0, %v918
    %920 = vmatmul.f32.gmra.mxu0 %v857
    %v921 = vpop.f32.mrf.mxu0
    %v922 = vadd.f32 0.0, %v921
    %923 = vmatmul.f32.gmra.mxu0 %v860
    %v924 = vpop.f32.mrf.mxu0
    %v925 = vadd.f32 0.0, %v924
    %926 = vmatmul.f32.gmra.mxu0 %v863
    %v927 = vpop.f32.mrf.mxu0
    %v928 = vadd.f32 0.0, %v927
    %929 = vmatmul.f32.gmra.mxu0 %v866
    %v930 = vpop.f32.mrf.mxu0
    %v931 = vadd.f32 0.0, %v930
    %932 = vmatmul.f32.gmra.mxu0 %v869
    %v933 = vpop.f32.mrf.mxu0
    %v934 = vadd.f32 0.0, %v933
    %935 = vmatmul.f32.gmra.mxu0 %v872
    %v936 = vpop.f32.mrf.mxu0
    %v937 = vadd.f32 0.0, %v936
    %938 = vmatmul.f32.gmra.mxu0 %v875
    %v939 = vpop.f32.mrf.mxu0
    %v940 = vadd.f32 0.0, %v939
    %941 = vmatmul.f32.gmra.mxu0 %v878
    %v942 = vpop.f32.mrf.mxu0
    %v943 = vadd.f32 0.0, %v942
    %944 = vmatmul.f32.gmra.mxu0 %v881
    %v945 = vpop.f32.mrf.mxu0
    %v946 = vadd.f32 0.0, %v945
    %947 = vmatmul.f32.gmra.mxu0 %v884
    %v948 = vpop.f32.mrf.mxu0
    %v949 = vadd.f32 0.0, %v948
    %950 = vmatmul.f32.gmra.mxu0 %v887
    %v951 = vpop.f32.mrf.mxu0
    %v952 = vadd.f32 0.0, %v951
    %953 = vmatmul.f32.gmra.mxu0 %v890
    %v954 = vpop.f32.mrf.mxu0
    %v955 = vadd.f32 0.0, %v954
    %956 = vdwg.mxu0
    %s957 = scalar_lea.vmem %s2, 64
    %v958 = vld [vmem:[%s957] sm:$0xff]
    %v959 = vld [vmem:[%s957 + $0x8] sm:$0xff]
    %v960 = vld [vmem:[%s957 + $0x10] sm:$0xff]
    %v961 = vld [vmem:[%s957 + $0x18] sm:$0xff]
    %v963 = vsel %vm504, %v910, 0
    %v966 = vsel %vm504, %v913, 0
    %v969 = vsel %vm504, %v916, 0
    %v972 = vsel %vm504, %v919, 0
    %v975 = vsel %vm504, %v922, 0
    %v978 = vsel %vm504, %v925, 0
    %v981 = vsel %vm504, %v928, 0
    %v984 = vsel %vm504, %v931, 0
    %v987 = vsel %vm504, %v934, 0
    %v990 = vsel %vm504, %v937, 0
    %v993 = vsel %vm504, %v940, 0
    %v996 = vsel %vm504, %v943, 0
    %v999 = vsel %vm504, %v946, 0
    %v1002 = vsel %vm504, %v949, 0
    %v1005 = vsel %vm504, %v952, 0
    %v1008 = vsel %vm504, %v955, 0
    %1010 = vmatpush.msra.mxu0 0.0
    %1011 = vmatpush.msra.mxu0 0.0
    %1012 = vmatpush.msra.mxu0 0.0
    %1013 = vmatpush.msra.mxu0 0.0
    %1014 = vmatpush.msra.mxu0 0.0
    %1015 = vmatpush.msra.mxu0 0.0
    %1016 = vmatpush.msra.mxu0 0.0
    %1017 = vmatpush.msra.mxu0 0.0
    %1018 = vmatpush.msra.mxu0 0.0
    %1019 = vmatpush.msra.mxu0 0.0
    %1020 = vmatpush.msra.mxu0 0.0
    %1021 = vmatpush.msra.mxu0 0.0
    %1022 = vmatpush.msra.mxu0 %v961
    %1023 = vmatpush.msra.mxu0 %v960
    %1024 = vmatpush.msra.mxu0 %v959
    %1025 = vmatpush.msra.mxu0 %v958
    %1026 = vmatmul.f32.gmra.mxu0 %v963
    %v1027 = vpop.f32.mrf.mxu0
    %v1028 = vadd.f32 0.0, %v1027
    %1029 = vmatmul.f32.gmra.mxu0 %v966
    %v1030 = vpop.f32.mrf.mxu0
    %v1031 = vadd.f32 0.0, %v1030
    %1032 = vmatmul.f32.gmra.mxu0 %v969
    %v1033 = vpop.f32.mrf.mxu0
    %v1034 = vadd.f32 0.0, %v1033
    %1035 = vmatmul.f32.gmra.mxu0 %v972
    %v1036 = vpop.f32.mrf.mxu0
    %v1037 = vadd.f32 0.0, %v1036
    %1038 = vmatmul.f32.gmra.mxu0 %v975
    %v1039 = vpop.f32.mrf.mxu0
    %v1040 = vadd.f32 0.0, %v1039
    %1041 = vmatmul.f32.gmra.mxu0 %v978
    %v1042 = vpop.f32.mrf.mxu0
    %v1043 = vadd.f32 0.0, %v1042
    %1044 = vmatmul.f32.gmra.mxu0 %v981
    %v1045 = vpop.f32.mrf.mxu0
    %v1046 = vadd.f32 0.0, %v1045
    %1047 = vmatmul.f32.gmra.mxu0 %v984
    %v1048 = vpop.f32.mrf.mxu0
    %v1049 = vadd.f32 0.0, %v1048
    %1050 = vmatmul.f32.gmra.mxu0 %v987
    %v1051 = vpop.f32.mrf.mxu0
    %v1052 = vadd.f32 0.0, %v1051
    %1053 = vmatmul.f32.gmra.mxu0 %v990
    %v1054 = vpop.f32.mrf.mxu0
    %v1055 = vadd.f32 0.0, %v1054
    %1056 = vmatmul.f32.gmra.mxu0 %v993
    %v1057 = vpop.f32.mrf.mxu0
    %v1058 = vadd.f32 0.0, %v1057
    %1059 = vmatmul.f32.gmra.mxu0 %v996
    %v1060 = vpop.f32.mrf.mxu0
    %v1061 = vadd.f32 0.0, %v1060
    %1062 = vmatmul.f32.gmra.mxu0 %v999
    %v1063 = vpop.f32.mrf.mxu0
    %v1064 = vadd.f32 0.0, %v1063
    %1065 = vmatmul.f32.gmra.mxu0 %v1002
    %v1066 = vpop.f32.mrf.mxu0
    %v1067 = vadd.f32 0.0, %v1066
    %1068 = vmatmul.f32.gmra.mxu0 %v1005
    %v1069 = vpop.f32.mrf.mxu0
    %v1070 = vadd.f32 0.0, %v1069
    %1071 = vmatmul.f32.gmra.mxu0 %v1008
    %v1072 = vpop.f32.mrf.mxu0
    %v1073 = vadd.f32 0.0, %v1072
    %1074 = vdwg.mxu0
    %v1075 = vadd.f32 %v684, %v1028
    %v1076 = vadd.f32 %v687, %v1031
    %v1077 = vadd.f32 %v690, %v1034
    %v1078 = vadd.f32 %v693, %v1037
    %v1079 = vadd.f32 %v696, %v1040
    %v1080 = vadd.f32 %v699, %v1043
    %v1081 = vadd.f32 %v702, %v1046
    %v1082 = vadd.f32 %v705, %v1049
    %v1083 = vadd.f32 %v708, %v1052
    %v1084 = vadd.f32 %v711, %v1055
    %v1085 = vadd.f32 %v714, %v1058
    %v1086 = vadd.f32 %v717, %v1061
    %v1087 = vadd.f32 %v720, %v1064
    %v1088 = vadd.f32 %v723, %v1067
    %v1089 = vadd.f32 %v726, %v1070
    %v1090 = vadd.f32 %v729, %v1073
    %v1091 = vld [vmem:[%s3] sm:$0x1]
    %v1093 = vperm.slane %v1091, 0
    %v1095 = vadd.f32 %v1075, %v1093
    %v1096 = vadd.f32 %v1076, %v1093
    %v1097 = vadd.f32 %v1077, %v1093
    %v1098 = vadd.f32 %v1078, %v1093
    %v1099 = vadd.f32 %v1079, %v1093
    %v1100 = vadd.f32 %v1080, %v1093
    %v1101 = vadd.f32 %v1081, %v1093
    %v1102 = vadd.f32 %v1082, %v1093
    %v1103 = vadd.f32 %v1083, %v1093
    %v1104 = vadd.f32 %v1084, %v1093
    %v1105 = vadd.f32 %v1085, %v1093
    %v1106 = vadd.f32 %v1086, %v1093
    %v1107 = vadd.f32 %v1087, %v1093
    %v1108 = vadd.f32 %v1088, %v1093
    %v1109 = vadd.f32 %v1089, %v1093
    %v1110 = vadd.f32 %v1090, %v1093
    %v1111 = vmax.f32 %v1095, 0.0
    %v1112 = vmax.f32 %v1096, 0.0
    %v1113 = vmax.f32 %v1097, 0.0
    %v1114 = vmax.f32 %v1098, 0.0
    %v1115 = vmax.f32 %v1099, 0.0
    %v1116 = vmax.f32 %v1100, 0.0
    %v1117 = vmax.f32 %v1101, 0.0
    %v1118 = vmax.f32 %v1102, 0.0
    %v1119 = vmax.f32 %v1103, 0.0
    %v1120 = vmax.f32 %v1104, 0.0
    %v1121 = vmax.f32 %v1105, 0.0
    %v1122 = vmax.f32 %v1106, 0.0
    %v1123 = vmax.f32 %v1107, 0.0
    %v1124 = vmax.f32 %v1108, 0.0
    %v1125 = vmax.f32 %v1109, 0.0
    %v1126 = vmax.f32 %v1110, 0.0
    %v1127 = vlaneseq
    %v1128 = vshrl.u32 %v1127, 7
    %v1129 = vadd.s32 %v1128, 8
    %vm1130 = vcmp.lt.s32.totalorder %v1128, 8
    %vm1131 = vcmp.lt.s32.totalorder %v1129, 8
    %v1132 = vsel %vm1130, %v1111, 0.0
    %v1133 = vsel %vm1131, %v1112, 0.0
    %v1134 = vsel %vm1130, %v1113, 0.0
    %v1135 = vsel %vm1131, %v1114, 0.0
    %v1136 = vsel %vm1130, %v1115, 0.0
    %v1137 = vsel %vm1131, %v1116, 0.0
    %v1138 = vsel %vm1130, %v1117, 0.0
    %v1139 = vsel %vm1131, %v1118, 0.0
    %v1140 = vsel %vm1130, %v1119, 0.0
    %v1141 = vsel %vm1131, %v1120, 0.0
    %v1142 = vsel %vm1130, %v1121, 0.0
    %v1143 = vsel %vm1131, %v1122, 0.0
    %v1144 = vsel %vm1130, %v1123, 0.0
    %v1145 = vsel %vm1131, %v1124, 0.0
    %v1146 = vsel %vm1130, %v1125, 0.0
    %v1147 = vsel %vm1131, %v1126, 0.0
    %vm1148 = vcmask 130048
    %v1149 = vsel %vm1148, %v1132, -inf
    %v1150 = vsel %vm1148, %v1133, -inf
    %v1151 = vmax.f32 %v1149, %v1150
    %v1152 = vrot.slane %v1151, 4
    %v1153 = vmax.f32 %v1151, %v1152
    %v1154 = vrot.slane %v1153, 2
    %v1155 = vmax.f32 %v1153, %v1154
    %v1156 = vrot.slane %v1155, 1
    %v1157 = vmax.f32 %v1155, %v1156
    %v1158 = vsel %vm1148, %v1134, -inf
    %v1159 = vsel %vm1148, %v1135, -inf
    %v1160 = vmax.f32 %v1158, %v1159
    %v1161 = vrot.slane %v1160, 4
    %v1162 = vmax.f32 %v1160, %v1161
    %v1163 = vrot.slane %v1162, 2
    %v1164 = vmax.f32 %v1162, %v1163
    %v1165 = vrot.slane %v1164, 1
    %v1166 = vmax.f32 %v1164, %v1165
    %v1167 = vsel %vm1148, %v1136, -inf
    %v1168 = vsel %vm1148, %v1137, -inf
    %v1169 = vmax.f32 %v1167, %v1168
    %v1170 = vrot.slane %v1169, 4
    %v1171 = vmax.f32 %v1169, %v1170
    %v1172 = vrot.slane %v1171, 2
    %v1173 = vmax.f32 %v1171, %v1172
    %v1174 = vrot.slane %v1173, 1
    %v1175 = vmax.f32 %v1173, %v1174
    %v1176 = vsel %vm1148, %v1138, -inf
    %v1177 = vsel %vm1148, %v1139, -inf
    %v1178 = vmax.f32 %v1176, %v1177
    %v1179 = vrot.slane %v1178, 4
    %v1180 = vmax.f32 %v1178, %v1179
    %v1181 = vrot.slane %v1180, 2
    %v1182 = vmax.f32 %v1180, %v1181
    %v1183 = vrot.slane %v1182, 1
    %v1184 = vmax.f32 %v1182, %v1183
    %v1185 = vsel %vm1148, %v1140, -inf
    %v1186 = vsel %vm1148, %v1141, -inf
    %v1187 = vmax.f32 %v1185, %v1186
    %v1188 = vrot.slane %v1187, 4
    %v1189 = vmax.f32 %v1187, %v1188
    %v1190 = vrot.slane %v1189, 2
    %v1191 = vmax.f32 %v1189, %v1190
    %v1192 = vrot.slane %v1191, 1
    %v1193 = vmax.f32 %v1191, %v1192
    %v1194 = vsel %vm1148, %v1142, -inf
    %v1195 = vsel %vm1148, %v1143, -inf
    %v1196 = vmax.f32 %v1194, %v1195
    %v1197 = vrot.slane %v1196, 4
    %v1198 = vmax.f32 %v1196, %v1197
    %v1199 = vrot.slane %v1198, 2
    %v1200 = vmax.f32 %v1198, %v1199
    %v1201 = vrot.slane %v1200, 1
    %v1202 = vmax.f32 %v1200, %v1201
    %v1203 = vsel %vm1148, %v1144, -inf
    %v1204 = vsel %vm1148, %v1145, -inf
    %v1205 = vmax.f32 %v1203, %v1204
    %v1206 = vrot.slane %v1205, 4
    %v1207 = vmax.f32 %v1205, %v1206
    %v1208 = vrot.slane %v1207, 2
    %v1209 = vmax.f32 %v1207, %v1208
    %v1210 = vrot.slane %v1209, 1
    %v1211 = vmax.f32 %v1209, %v1210
    %v1212 = vsel %vm1148, %v1146, -inf
    %v1213 = vsel %vm1148, %v1147, -inf
    %v1214 = vmax.f32 %v1212, %v1213
    %v1215 = vrot.slane %v1214, 4
    %v1216 = vmax.f32 %v1214, %v1215
    %v1217 = vrot.slane %v1216, 2
    %v1218 = vmax.f32 %v1216, %v1217
    %v1219 = vrot.slane %v1218, 1
    %v1220 = vmax.f32 %v1218, %v1219
    %v1221 = vld [vmem:[%s4] sm:$0xff]
    %v1222 = vld [vmem:[%s4 + $0x8] sm:$0xff]
    %v1223 = vld [vmem:[%s5] sm:$0x1]
    %v1225 = vperm.slane %v1223, 0
    %vm1235 = vcmask 1041409
    %v1236 = vsel %vm1235, %v1166, %v1157
    %vm1237 = vcmask 1042434
    %v1238 = vsel %vm1237, %v1175, %v1236
    %vm1239 = vcmask 1043459
    %v1240 = vsel %vm1239, %v1184, %v1238
    %vm1241 = vcmask 1044484
    %v1242 = vsel %vm1241, %v1193, %v1240
    %vm1243 = vcmask 1045509
    %v1244 = vsel %vm1243, %v1202, %v1242
    %vm1245 = vcmask 1046534
    %v1246 = vsel %vm1245, %v1211, %v1244
    %vm1247 = vcmask 1047559
    %v1248 = vsel %vm1247, %v1220, %v1246
    %v1249 = vsel %vm1148, %v1248, 0
    %1251 = vmatpush.msra.mxu0 0.0
    %1252 = vmatpush.msra.mxu0 0.0
    %1253 = vmatpush.msra.mxu0 0.0
    %1254 = vmatpush.msra.mxu0 0.0
    %1255 = vmatpush.msra.mxu0 0.0
    %1256 = vmatpush.msra.mxu0 0.0
    %1257 = vmatpush.msra.mxu0 0.0
    %1258 = vmatpush.msra.mxu0 0.0
    %1259 = vmatpush.msra.mxu0 0.0
    %1260 = vmatpush.msra.mxu0 0.0
    %1261 = vmatpush.msra.mxu0 0.0
    %1262 = vmatpush.msra.mxu0 0.0
    %1263 = vmatpush.msra.mxu0 0.0
    %1264 = vmatpush.msra.mxu0 0.0
    %1265 = vmatpush.msra.mxu0 %v1222
    %1266 = vmatpush.msra.mxu0 %v1221
    %1267 = vmatmul.f32.gmra.mxu0 %v1249
    %v1268 = vpop.f32.mrf.mxu0
    %v1269 = vadd.f32 %v1225, %v1268
    %1270 = vdwg.mxu0
    %1271 = vst [vmem:[#allocation2] sm:$0xff] %v1269
    // Predicated region
    $region26: #{tpu_custom_call.1} parent=1 // pred_check
      _
    $region27: #{tpu_custom_call.1} parent=1 // pred_check_branch
      %1273 = sbr.rel (0) target = $region29
    $region28: #{tpu_custom_call.1} parent=1 // pred_region
      %1275 = vsyncadd [#allocation3], 0
      %s1277 = sshll.u32 [#allocation2], 4
      %s1278 = int_to_ptr.vmem [resolvable:$true] %s1277
      %s1279 = sshll.u32 %s6, 4
      %s1280 = int_to_ptr.hbm [resolvable:$true] %s1279
      %1282 = dma.vmem_to_hbm [thread:$0]  %s1278, 128, %s1280, [#allocation3]
    $region29: #{tpu_custom_call.1} parent=1 // pred_fallthru
      _
    // Predicated region
    $region30: #{tpu_custom_call.1} parent=1 // pred_check
      _
    $region31: #{tpu_custom_call.1} parent=1 // pred_check_branch
      %1284 = sbr.rel (0) target = $region33
    $region32: #{tpu_custom_call.1} parent=1 // pred_region
      %1286 = dma.done [#allocation3], 128
    $region33: #{tpu_custom_call.1} parent=1 // pred_fallthru
      _
    %1287 = vsyncpa [#allocation3], 1

</llo_original>
